<compile_context>
chip_gen: v7x
topology: tpu7x:2x2x1
jax: 0.10.0
libtpu: 0.0.40
codegen_flags: <defaults>
</compile_context>

<pallas_src>
import math

import jax
import jax.numpy as jnp
from jax.experimental import pallas as pl
from jax.experimental.pallas import tpu as pltpu


def _round_up(x, m):
    return ((x + m - 1) // m) * m


def _linear_kernel(x_ref, w_ref, b_ref, o_ref):
    # x_ref: (TILE, Kp)  w_ref: (Kp, Hp)  b_ref: (1, Hp)  o_ref: (TILE, Hp)
    acc = jnp.dot(
        x_ref[...],
        w_ref[...],
        preferred_element_type=jnp.float32,
        precision=jax.lax.Precision.HIGHEST,   # true-f32 MXU passes (exact Linear)
    )
    o_ref[...] = (acc + b_ref[...]).astype(o_ref.dtype)


def _min_fold(d):
    """Smallest f such that d * f is a multiple of 128 (lane width)."""
    return 128 // math.gcd(d, 128)


def _choose_fold(M, input_dim, hidden_dim):
    """Pick the row-packing factor.

    Prefer fold = lcm(fold_h, fold_k) so both the packed contraction dim
    (Kp = fold*K) and the packed output dim (Hp = fold*H) are 128-lane dense.
    If that fold doesn't divide M, relax it (in multiples of fold_h, keeping
    the store side lane-dense) to a value that divides M so no whole-array
    pad/slice copies are needed.
    """
    fold_h = _min_fold(hidden_dim)
    fold_k = _min_fold(input_dim)
    fold = (fold_h * fold_k) // math.gcd(fold_h, fold_k)
    # Guard against pathological dims blowing up the resident weight (>8 MiB).
    if input_dim * fold * hidden_dim * fold * 4 > (8 << 20):
        fold = fold_h
    if M % fold != 0:
        for cand in range(fold - fold_h, 0, -fold_h):
            if M % cand == 0:
                fold = cand
                break
    return fold


def _pick_tile(mp, Hp, itemsize=4):
    """Packed-row tile size: ~1 MiB output buffers, but keep >= ~4 grid steps."""
    if mp <= 32:
        return mp                                   # single block (full array dims)
    target_bytes = 1 << 20                          # ~1 MiB output tile
    cap = max(8, (target_bytes // (Hp * itemsize)) // 8 * 8)
    quarter = _round_up(-(-mp // 4), 8)             # >= 4 steps for overlap / 2 TCs
    return max(8, min(cap, quarter))


def server_encoder_linear(x, w, b, *, use_pallas=None, out_dtype=None):
    """y = x @ w + b over the last axis of x, via a Pallas TPU kernel.

    x: (batch, seq, input_dim) float32
    w: (input_dim, hidden_dim) float32   (transposed vs. PyTorch's weight)
    b: (hidden_dim,) float32
    out_dtype: optional output dtype (e.g. jnp.bfloat16) to halve write traffic.
    """
    batch, seq, input_dim = x.shape
    hidden_dim = w.shape[1]
    M = batch * seq
    out_dtype = x.dtype if out_dtype is None else out_dtype

    if use_pallas is None:
        # µs-scale pallas_call overhead dwarfs tiny problems; let XLA fuse them.
        use_pallas = M * hidden_dim >= (1 << 18)
    if not use_pallas:
        return (jnp.dot(x, w, precision=jax.lax.Precision.HIGHEST) + b).astype(out_dtype)

    # ---- Lane-density fold: pack `fold` logical rows per packed row. ----
    fold = _choose_fold(M, input_dim, hidden_dim)
    Kp = input_dim * fold
    Hp = hidden_dim * fold

    # Block-diagonal packed weight and tiled bias (resident in VMEM).
    w_packed = jnp.kron(jnp.eye(fold, dtype=w.dtype), w)          # (Kp, Hp)
    b_packed = jnp.tile(b, (fold,)).reshape(1, Hp)                # (1, Hp)

    # ---- Pack rows (pure reshape when fold | M; pad only for tiny awkward M).
    x2d = x.reshape(M, input_dim)
    needs_pad = (M % fold) != 0
    if needs_pad:
        M_pad = _round_up(M, fold)
        x2d = jnp.pad(x2d, ((0, M_pad - M), (0, 0)))
    else:
        M_pad = M
    mp = M_pad // fold
    x_packed = x2d.reshape(mp, Kp)

    tile_mp = _pick_tile(mp, Hp)
    grid = (pl.cdiv(mp, tile_mp),)

    cost = pl.CostEstimate(
        flops=2 * mp * Kp * Hp,
        transcendentals=0,
        bytes_accessed=4 * (mp * Kp + Kp * Hp + Hp) + mp * Hp * jnp.dtype(out_dtype).itemsize,
    )

    out_packed = pl.pallas_call(
        _linear_kernel,
        out_shape=jax.ShapeDtypeStruct((mp, Hp), out_dtype),
        grid_spec=pl.GridSpec(
            grid=grid,
            in_specs=[
                pl.BlockSpec((tile_mp, Kp), lambda i: (i, 0)),    # x tiles stream
                pl.BlockSpec((Kp, Hp), lambda i: (0, 0)),         # weight resident
                pl.BlockSpec((1, Hp), lambda i: (0, 0)),          # bias resident
            ],
            out_specs=pl.BlockSpec((tile_mp, Hp), lambda i: (i, 0)),
        ),
        compiler_params=pltpu.CompilerParams(
            dimension_semantics=("parallel",),
        ),
        cost_estimate=cost,
    )(x_packed, w_packed, b_packed)

    # (mp, fold*H) row-major == (mp*fold, H) row-major: reshape is free.
    out2d = out_packed.reshape(M_pad, hidden_dim)
    if needs_pad:
        out2d = out2d[:M]
    return out2d.reshape(batch, seq, hidden_dim)


def init_linear_params(key, input_dim, hidden_dim):
    """Deterministic init mimicking nn.Linear's uniform(-1/sqrt(in), 1/sqrt(in))."""
    kw, kb = jax.random.split(key)
    bound = 1.0 / (input_dim ** 0.5)
    # PyTorch stores weight as (hidden_dim, input_dim); we keep the transposed
    # layout (input_dim, hidden_dim) so the kernel does x @ w directly.
    w = jax.random.uniform(kw, (input_dim, hidden_dim), jnp.float32, -bound, bound)
    b = jax.random.uniform(kb, (hidden_dim,), jnp.float32, -bound, bound)
    return w, b


if __name__ == "__main__":
    # ServerEncoder(input_dim=4, hidden_dim=32, embedding_type='linear')
    input_dim = 4
    hidden_dim = 32

    key = jax.random.PRNGKey(0)
    kx, kp, kx2 = jax.random.split(key, 3)
    w, b = init_linear_params(kp, input_dim, hidden_dim)

    # Small demo shape (batch=2, seq=8) — force the Pallas path so the kernel runs.
    batch, seq = 2, 8
    x = jax.random.normal(kx, (batch, seq, input_dim), dtype=jnp.float32)
    out = server_encoder_linear(x, w, b, use_pallas=True)
    jax.block_until_ready(out)
    ref = jnp.dot(x, w, precision=jax.lax.Precision.HIGHEST) + b
    assert out.shape == (batch, seq, hidden_dim)
    assert jnp.allclose(out, ref, atol=1e-5, rtol=1e-5)

    # Larger case exercising the multi-tile (grid > 1), pipelined path.
    batch2, seq2 = 8, 512
    x_big = jax.random.normal(kx2, (batch2, seq2, input_dim), dtype=jnp.float32)
    out_big = server_encoder_linear(x_big, w, b, use_pallas=True)
    jax.block_until_ready(out_big)
    ref_big = jnp.dot(x_big, w, precision=jax.lax.Precision.HIGHEST) + b
    assert out_big.shape == (batch2, seq2, hidden_dim)
    assert jnp.allclose(out_big, ref_big, atol=1e-5, rtol=1e-5)

    # TODO(synk): embedding_type='transformer' (GraphAttentionEncoder) branch is
    # not implemented; only the 'linear' branch used by default is translated.
    print("KERNEL_OK")
</pallas_src>

<mosaic_0001>
module attributes {stable_mosaic.version = 11 : i64} {
  func.func @_linear_kernel(%arg0: i32, %arg1: memref<1x64xf32, #tpu.memory_space<vmem>>, %arg2: memref<64x512xf32, #tpu.memory_space<vmem>>, %arg3: memref<1x512xf32, #tpu.memory_space<vmem>>, %arg4: memref<1x512xf32, #tpu.memory_space<vmem>>) attributes {dimension_semantics = [#tpu.dimension_semantics<parallel>], iteration_bounds = array<i64: 1>, scalar_prefetch = 0 : i64, scratch_operands = 0 : i64, tpu.core_type = #tpu.core_type<tc>, window_params = [{transform_indices = @transform_0, window_bounds = array<i64: 1, 64>}, {pipeline_mode = #tpu.pipeline_mode<synchronous>, transform_indices = @transform_1, window_bounds = array<i64: 64, 512>}, {pipeline_mode = #tpu.pipeline_mode<synchronous>, transform_indices = @transform_2, window_bounds = array<i64: 1, 512>}, {transform_indices = @transform_3, window_bounds = array<i64: 1, 512>}]} {
    %c0 = arith.constant 0 : index
    %c0_0 = arith.constant 0 : index
    %0 = vector.load %arg1[%c0, %c0_0] : memref<1x64xf32, #tpu.memory_space<vmem>>, vector<1x64xf32>
    %c0_1 = arith.constant 0 : index
    %c0_2 = arith.constant 0 : index
    %1 = vector.load %arg2[%c0_1, %c0_2] : memref<64x512xf32, #tpu.memory_space<vmem>>, vector<64x512xf32>
    %cst = arith.constant dense<0.000000e+00> : vector<1x512xf32>
    %2 = tpu.matmul %0, %1, %cst {dimension_numbers = #tpu.dot_dimension_numbers<[1], [0], [0], [1], [0, 0, 1, 1], [], []>, precision = #tpu.contract_precision<fp32>} : vector<1x64xf32>, vector<64x512xf32>, vector<1x512xf32> -> vector<1x512xf32>
    %c0_3 = arith.constant 0 : index
    %c0_4 = arith.constant 0 : index
    %3 = vector.load %arg3[%c0_3, %c0_4] : memref<1x512xf32, #tpu.memory_space<vmem>>, vector<1x512xf32>
    %4 = arith.addf %2, %3 : vector<1x512xf32>
    %c0_5 = arith.constant 0 : index
    %c0_6 = arith.constant 0 : index
    %5 = vector.load %arg4[%c0_5, %c0_6] : memref<1x512xf32, #tpu.memory_space<vmem>>, vector<1x512xf32>
    tpu.vector_store %arg4[%c0_5, %c0_6], %4 {strides = array<i32>} : memref<1x512xf32, #tpu.memory_space<vmem>>, vector<1x512xf32>,
    return
  }
  func.func @transform_0(%arg0: i32) -> (i32, i32) {
    %c0_i32 = arith.constant 0 : i32
    %c0_i32_0 = arith.constant 0 : i32
    return %arg0, %c0_i32 : i32, i32
  }
  func.func @transform_1(%arg0: i32) -> (i32, i32) {
    %c0_i32 = arith.constant 0 : i32
    %c0_i32_0 = arith.constant 0 : i32
    %c0_i32_1 = arith.constant 0 : i32
    return %c0_i32, %c0_i32_0 : i32, i32
  }
  func.func @transform_2(%arg0: i32) -> (i32, i32) {
    %c0_i32 = arith.constant 0 : i32
    %c0_i32_0 = arith.constant 0 : i32
    %c0_i32_1 = arith.constant 0 : i32
    return %c0_i32, %c0_i32_0 : i32, i32
  }
  func.func @transform_3(%arg0: i32) -> (i32, i32) {
    %c0_i32 = arith.constant 0 : i32
    %c0_i32_0 = arith.constant 0 : i32
    return %arg0, %c0_i32 : i32, i32
  }
}

</mosaic_0001>

<llo_original>
// kernel: tpu_custom_call.1
$region0: #{tpu_custom_call.1}
  #allocation0 [shape = 'u32[]', space=smem, size = 0x4, offset = 0x4, fixed_abs, tag = 'smem constant byte address 0x4 - core index']
  #allocation1 [shape = 'u32[144,128]{1,0:T(1,128)}', space=vmem, size = 0x12000, scoped, tag = 'internal scratch']
  %s0 = inlined_call_operand.hbm [shape: f32[1,64], index: 0, kind: input, shape index: {}]
  %s1 = inlined_call_operand.hbm [shape: f32[64,512], index: 1, kind: input, shape index: {}]
  %s2 = inlined_call_operand.vmem [shape: f32[1,512], index: 2, kind: input, shape index: {}]
  %s3 = inlined_call_operand.hbm [shape: f32[1,512], index: 3, kind: output, shape index: {}]
  %s4 = sld [smem:[#allocation0]]
  $region30: #{tpu_custom_call.1} parent=0
    _
  %s6 = ssub.s32 1, %s4
  %s7 = scalar_select 0, %s6, %s4
  $region1: #{tpu_custom_call.1} parent=0
    #allocation2 [shape = 'u8[512]{0}', space=vmem, size = 0x400, scoped, tag = 'input window, operand 0, single buffered']
    #allocation3 [shape = 's32[1]{0}', space=sflag, size = 0x4, scoped, tag = 'scoped memory for tpu_custom_call.1']
    #allocation4 [shape = 's32[1]{0}', space=sflag, size = 0x4, scoped, tag = 'scoped memory for tpu_custom_call.1']
    #allocation5 [shape = 'u8[131072]{0}', space=vmem, size = 0x20000, scoped, tag = 'input window, operand 1, single buffered']
    #allocation6 [shape = 's32[1]{0}', space=sflag, size = 0x4, scoped, tag = 'scoped memory for tpu_custom_call.1']
    #allocation7 [shape = 'u8[2048]{0}', space=vmem, size = 0x800, scoped, tag = 'output window, operand 0, single buffered']
    %8 = vsyncpa [#allocation3], 0
    %9 = vsyncpa [#allocation6], 0
    %10 = vsyncpa [#allocation4], 0
    // Predicated region
    $region2: #{tpu_custom_call.1} parent=1 // pred_check
      _
    $region3: #{tpu_custom_call.1} parent=1 // pred_check_branch
      %12 = sbr.rel (0) target = $region5
    $region4: #{tpu_custom_call.1} parent=1 // pred_region
      %s14 = ssub.s32 16, 16
      %15 = vsyncadd [#allocation3], %s14
      %s17 = sshll.u32 [#allocation2], 4
      %s18 = int_to_ptr.vmem [resolvable:$true] %s17
      %20 = dma.hbm_to_vmem [thread:$0]  %s0, 16, %s18, [#allocation3]
    $region5: #{tpu_custom_call.1} parent=1 // pred_fallthru
      _
    // Predicated region
    $region6: #{tpu_custom_call.1} parent=1 // pred_check
      _
    $region7: #{tpu_custom_call.1} parent=1 // pred_check_branch
      %22 = sbr.rel (0) target = $region9
    $region8: #{tpu_custom_call.1} parent=1 // pred_region
      %s24 = ssub.s32 4096, 4096
      %25 = vsyncadd [#allocation6], %s24
      %s26 = sshll.u32 [#allocation5], 4
      %s27 = int_to_ptr.vmem [resolvable:$true] %s26
      %32 = dma.hbm_to_vmem [thread:$0]  %s1, 4096, %s27, [#allocation6], 512, 512, 32
    $region9: #{tpu_custom_call.1} parent=1 // pred_fallthru
      _
    // Predicated region
    $region10: #{tpu_custom_call.1} parent=1 // pred_check
      _
    $region11: #{tpu_custom_call.1} parent=1 // pred_check_branch
      %34 = sbr.rel (0) target = $region13
    $region12: #{tpu_custom_call.1} parent=1 // pred_region
      _
    $region13: #{tpu_custom_call.1} parent=1 // pred_fallthru
      _
    // Predicated region
    $region14: #{tpu_custom_call.1} parent=1 // pred_check
      _
    $region15: #{tpu_custom_call.1} parent=1 // pred_check_branch
      %36 = sbr.rel (0) target = $region17
    $region16: #{tpu_custom_call.1} parent=1 // pred_region
      %37 = dma.done [#allocation3], 16
    $region17: #{tpu_custom_call.1} parent=1 // pred_fallthru
      _
    // Predicated region
    $region18: #{tpu_custom_call.1} parent=1 // pred_check
      _
    $region19: #{tpu_custom_call.1} parent=1 // pred_check_branch
      %39 = sbr.rel (0) target = $region21
    $region20: #{tpu_custom_call.1} parent=1 // pred_region
      %40 = dma.done [#allocation6], 4096
    $region21: #{tpu_custom_call.1} parent=1 // pred_fallthru
      _
    %v41 = vld [vmem:[#allocation2] sm:$0x1]
    %v42 = vld [vmem:[#allocation5] sm:$0xff]
    %v43 = vld [vmem:[#allocation5 + $0x8] sm:$0xff]
    %v44 = vld [vmem:[#allocation5 + $0x10] sm:$0xff]
    %v45 = vld [vmem:[#allocation5 + $0x18] sm:$0xff]
    %v46 = vld [vmem:[#allocation5 + $0x20] sm:$0xff]
    %v47 = vld [vmem:[#allocation5 + $0x28] sm:$0xff]
    %v48 = vld [vmem:[#allocation5 + $0x30] sm:$0xff]
    %v49 = vld [vmem:[#allocation5 + $0x38] sm:$0xff]
    %v50 = vld [vmem:[#allocation5 + $0x40] sm:$0xff]
    %v51 = vld [vmem:[#allocation5 + $0x48] sm:$0xff]
    %v52 = vld [vmem:[#allocation5 + $0x50] sm:$0xff]
    %v53 = vld [vmem:[#allocation5 + $0x58] sm:$0xff]
    %v54 = vld [vmem:[#allocation5 + $0x60] sm:$0xff]
    %v55 = vld [vmem:[#allocation5 + $0x68] sm:$0xff]
    %v56 = vld [vmem:[#allocation5 + $0x70] sm:$0xff]
    %v57 = vld [vmem:[#allocation5 + $0x78] sm:$0xff]
    %v58 = vld [vmem:[#allocation5 + $0x80] sm:$0xff]
    %v59 = vld [vmem:[#allocation5 + $0x88] sm:$0xff]
    %v60 = vld [vmem:[#allocation5 + $0x90] sm:$0xff]
    %v61 = vld [vmem:[#allocation5 + $0x98] sm:$0xff]
    %v62 = vld [vmem:[#allocation5 + $0xa0] sm:$0xff]
    %v63 = vld [vmem:[#allocation5 + $0xa8] sm:$0xff]
    %v64 = vld [vmem:[#allocation5 + $0xb0] sm:$0xff]
    %v65 = vld [vmem:[#allocation5 + $0xb8] sm:$0xff]
    %v66 = vld [vmem:[#allocation5 + $0xc0] sm:$0xff]
    %v67 = vld [vmem:[#allocation5 + $0xc8] sm:$0xff]
    %v68 = vld [vmem:[#allocation5 + $0xd0] sm:$0xff]
    %v69 = vld [vmem:[#allocation5 + $0xd8] sm:$0xff]
    %v70 = vld [vmem:[#allocation5 + $0xe0] sm:$0xff]
    %v71 = vld [vmem:[#allocation5 + $0xe8] sm:$0xff]
    %v72 = vld [vmem:[#allocation5 + $0xf0] sm:$0xff]
    %v73 = vld [vmem:[#allocation5 + $0xf8] sm:$0xff]
    %v74 = vld [vmem:[%s2] sm:$0xf]
    %v76 = vlaneseq
    %v77 = vshrl.u32 %v76, 7
    %v78 = vsub.s32 0, %v77
    %v79 = vrot.slane %v74, %v78
    %v80 = vlaneseq
    %v81 = vshrl.u32 %v80, 7
    %v82 = vsub.s32 1, %v81
    %v83 = vrot.slane %v74, %v82
    %v84 = vlaneseq
    %v85 = vshrl.u32 %v84, 7
    %v86 = vsub.s32 2, %v85
    %v87 = vrot.slane %v74, %v86
    %v88 = vlaneseq
    %v89 = vshrl.u32 %v88, 7
    %v90 = vsub.s32 3, %v89
    %v91 = vrot.slane %v74, %v90
    %vm96 = vcmask 523264
    %v98 = vsel %vm96, %v41, 0
    %v100 = vand.u32 %v43, 4294901760
    %101 = vmatprep.subr.mxu0 %v100
    %v102 = vand.u32 %v42, 4294901760
    %103 = vmatpush1.msra.mxu0 %v102
    %v104 = vand.u32 %v47, 4294901760
    %105 = vmatprep.subr.mxu0 %v104
    %v106 = vand.u32 %v46, 4294901760
    %107 = vmatpush1.msra.mxu0 %v106
    %v108 = vand.u32 %v51, 4294901760
    %109 = vmatprep.subr.mxu0 %v108
    %v110 = vand.u32 %v50, 4294901760
    %111 = vmatpush1.msra.mxu0 %v110
    %v112 = vand.u32 %v55, 4294901760
    %113 = vmatprep.subr.mxu0 %v112
    %v114 = vand.u32 %v54, 4294901760
    %115 = vmatpush1.msra.mxu0 %v114
    %v116 = vand.u32 %v59, 4294901760
    %117 = vmatprep.subr.mxu0 %v116
    %v118 = vand.u32 %v58, 4294901760
    %119 = vmatpush1.msra.mxu0 %v118
    %v120 = vand.u32 %v63, 4294901760
    %121 = vmatprep.subr.mxu0 %v120
    %v122 = vand.u32 %v62, 4294901760
    %123 = vmatpush1.msra.mxu0 %v122
    %v124 = vand.u32 %v67, 4294901760
    %125 = vmatprep.subr.mxu0 %v124
    %v126 = vand.u32 %v66, 4294901760
    %127 = vmatpush1.msra.mxu0 %v126
    %v128 = vand.u32 %v71, 4294901760
    %129 = vmatprep.subr.mxu0 %v128
    %v130 = vand.u32 %v70, 4294901760
    %131 = vmatpush1.msra.mxu0 %v130
    %132 = vmatprep.subr.mxu0 0.0
    %133 = vmatpush1.msra.mxu0 0.0
    %134 = vmatprep.subr.mxu0 0.0
    %135 = vmatpush1.msra.mxu0 0.0
    %136 = vmatprep.subr.mxu0 0.0
    %137 = vmatpush1.msra.mxu0 0.0
    %138 = vmatprep.subr.mxu0 0.0
    %139 = vmatpush1.msra.mxu0 0.0
    %140 = vmatprep.subr.mxu0 0.0
    %141 = vmatpush1.msra.mxu0 0.0
    %142 = vmatprep.subr.mxu0 0.0
    %143 = vmatpush1.msra.mxu0 0.0
    %144 = vmatprep.subr.mxu0 0.0
    %145 = vmatpush1.msra.mxu0 0.0
    %146 = vmatprep.subr.mxu0 0.0
    %147 = vmatpush1.msra.mxu0 0.0
    %148 = vmatprep.subr.mxu0 0.0
    %149 = vmatpush1.msra.mxu0 0.0
    %150 = vmatprep.subr.mxu0 0.0
    %151 = vmatpush1.msra.mxu0 0.0
    %152 = vmatprep.subr.mxu0 0.0
    %153 = vmatpush1.msra.mxu0 0.0
    %154 = vmatprep.subr.mxu0 0.0
    %155 = vmatpush1.msra.mxu0 0.0
    %156 = vmatprep.subr.mxu0 0.0
    %157 = vmatpush1.msra.mxu0 0.0
    %158 = vmatprep.subr.mxu0 0.0
    %159 = vmatpush1.msra.mxu0 0.0
    %160 = vmatprep.subr.mxu0 0.0
    %161 = vmatpush1.msra.mxu0 0.0
    %162 = vmatprep.subr.mxu0 0.0
    %163 = vmatpush1.msra.mxu0 0.0
    %164 = vmatprep.subr.mxu0 0.0
    %165 = vmatpush1.msra.mxu0 0.0
    %166 = vmatprep.subr.mxu0 0.0
    %167 = vmatpush1.msra.mxu0 0.0
    %168 = vmatprep.subr.mxu0 0.0
    %169 = vmatpush1.msra.mxu0 0.0
    %170 = vmatprep.subr.mxu0 0.0
    %171 = vmatpush1.msra.mxu0 0.0
    %172 = vmatprep.subr.mxu0 0.0
    %173 = vmatpush1.msra.mxu0 0.0
    %174 = vmatprep.subr.mxu0 0.0
    %175 = vmatpush1.msra.mxu0 0.0
    %176 = vmatprep.subr.mxu0 0.0
    %177 = vmatpush1.msra.mxu0 0.0
    %178 = vmatprep.subr.mxu0 0.0
    %179 = vmatpush1.msra.mxu0 0.0
    %180 = vmatprep.mubr.f32.mxu0 0.0
    %v181 = vand.u32 %v98, 4294901760
    %v182 = vsub.f32 %v98, %v181
    %v183 = vand.u32 %v182, 4294901760
    %v184 = vsub.f32 %v182, %v183
    %v185 = vand.u32 %v184, 4294901760
    %186 = vmatmul.mubr.f32.gmra.mrb[0].mxu0 %v185
    %v187 = vpop.f32.mrb[0].mxu0
    %v188 = vadd.f32 %v79, %v187
    %v189 = vpop.f32.mrb[0].mxu0
    %v190 = vadd.f32 %v83, %v189
    %191 = vdwg.mxu0
    %v192 = vand.u32 %v43, 4294901760
    %v193 = vsub.f32 %v43, %v192
    %v194 = vand.u32 %v193, 4294901760
    %v195 = vsub.f32 %v193, %v194
    %v196 = vand.u32 %v195, 4294901760
    %197 = vmatprep.subr.mxu0 %v196
    %v198 = vand.u32 %v42, 4294901760
    %v199 = vsub.f32 %v42, %v198
    %v200 = vand.u32 %v199, 4294901760
    %v201 = vsub.f32 %v199, %v200
    %v202 = vand.u32 %v201, 4294901760
    %203 = vmatpush1.msra.mxu0 %v202
    %v204 = vand.u32 %v47, 4294901760
    %v205 = vsub.f32 %v47, %v204
    %v206 = vand.u32 %v205, 4294901760
    %v207 = vsub.f32 %v205, %v206
    %v208 = vand.u32 %v207, 4294901760
    %209 = vmatprep.subr.mxu0 %v208
    %v210 = vand.u32 %v46, 4294901760
    %v211 = vsub.f32 %v46, %v210
    %v212 = vand.u32 %v211, 4294901760
    %v213 = vsub.f32 %v211, %v212
    %v214 = vand.u32 %v213, 4294901760
    %215 = vmatpush1.msra.mxu0 %v214
    %v216 = vand.u32 %v51, 4294901760
    %v217 = vsub.f32 %v51, %v216
    %v218 = vand.u32 %v217, 4294901760
    %v219 = vsub.f32 %v217, %v218
    %v220 = vand.u32 %v219, 4294901760
    %221 = vmatprep.subr.mxu0 %v220
    %v222 = vand.u32 %v50, 4294901760
    %v223 = vsub.f32 %v50, %v222
    %v224 = vand.u32 %v223, 4294901760
    %v225 = vsub.f32 %v223, %v224
    %v226 = vand.u32 %v225, 4294901760
    %227 = vmatpush1.msra.mxu0 %v226
    %v228 = vand.u32 %v55, 4294901760
    %v229 = vsub.f32 %v55, %v228
    %v230 = vand.u32 %v229, 4294901760
    %v231 = vsub.f32 %v229, %v230
    %v232 = vand.u32 %v231, 4294901760
    %233 = vmatprep.subr.mxu0 %v232
    %v234 = vand.u32 %v54, 4294901760
    %v235 = vsub.f32 %v54, %v234
    %v236 = vand.u32 %v235, 4294901760
    %v237 = vsub.f32 %v235, %v236
    %v238 = vand.u32 %v237, 4294901760
    %239 = vmatpush1.msra.mxu0 %v238
    %v240 = vand.u32 %v59, 4294901760
    %v241 = vsub.f32 %v59, %v240
    %v242 = vand.u32 %v241, 4294901760
    %v243 = vsub.f32 %v241, %v242
    %v244 = vand.u32 %v243, 4294901760
    %245 = vmatprep.subr.mxu0 %v244
    %v246 = vand.u32 %v58, 4294901760
    %v247 = vsub.f32 %v58, %v246
    %v248 = vand.u32 %v247, 4294901760
    %v249 = vsub.f32 %v247, %v248
    %v250 = vand.u32 %v249, 4294901760
    %251 = vmatpush1.msra.mxu0 %v250
    %v252 = vand.u32 %v63, 4294901760
    %v253 = vsub.f32 %v63, %v252
    %v254 = vand.u32 %v253, 4294901760
    %v255 = vsub.f32 %v253, %v254
    %v256 = vand.u32 %v255, 4294901760
    %257 = vmatprep.subr.mxu0 %v256
    %v258 = vand.u32 %v62, 4294901760
    %v259 = vsub.f32 %v62, %v258
    %v260 = vand.u32 %v259, 4294901760
    %v261 = vsub.f32 %v259, %v260
    %v262 = vand.u32 %v261, 4294901760
    %263 = vmatpush1.msra.mxu0 %v262
    %v264 = vand.u32 %v67, 4294901760
    %v265 = vsub.f32 %v67, %v264
    %v266 = vand.u32 %v265, 4294901760
    %v267 = vsub.f32 %v265, %v266
    %v268 = vand.u32 %v267, 4294901760
    %269 = vmatprep.subr.mxu0 %v268
    %v270 = vand.u32 %v66, 4294901760
    %v271 = vsub.f32 %v66, %v270
    %v272 = vand.u32 %v271, 4294901760
    %v273 = vsub.f32 %v271, %v272
    %v274 = vand.u32 %v273, 4294901760
    %275 = vmatpush1.msra.mxu0 %v274
    %v276 = vand.u32 %v71, 4294901760
    %v277 = vsub.f32 %v71, %v276
    %v278 = vand.u32 %v277, 4294901760
    %v279 = vsub.f32 %v277, %v278
    %v280 = vand.u32 %v279, 4294901760
    %281 = vmatprep.subr.mxu0 %v280
    %v282 = vand.u32 %v70, 4294901760
    %v283 = vsub.f32 %v70, %v282
    %v284 = vand.u32 %v283, 4294901760
    %v285 = vsub.f32 %v283, %v284
    %v286 = vand.u32 %v285, 4294901760
    %287 = vmatpush1.msra.mxu0 %v286
    %288 = vmatprep.subr.mxu0 0.0
    %289 = vmatpush1.msra.mxu0 0.0
    %290 = vmatprep.subr.mxu0 0.0
    %291 = vmatpush1.msra.mxu0 0.0
    %292 = vmatprep.subr.mxu0 0.0
    %293 = vmatpush1.msra.mxu0 0.0
    %294 = vmatprep.subr.mxu0 0.0
    %295 = vmatpush1.msra.mxu0 0.0
    %296 = vmatprep.subr.mxu0 0.0
    %297 = vmatpush1.msra.mxu0 0.0
    %298 = vmatprep.subr.mxu0 0.0
    %299 = vmatpush1.msra.mxu0 0.0
    %300 = vmatprep.subr.mxu0 0.0
    %301 = vmatpush1.msra.mxu0 0.0
    %302 = vmatprep.subr.mxu0 0.0
    %303 = vmatpush1.msra.mxu0 0.0
    %304 = vmatprep.subr.mxu0 0.0
    %305 = vmatpush1.msra.mxu0 0.0
    %306 = vmatprep.subr.mxu0 0.0
    %307 = vmatpush1.msra.mxu0 0.0
    %308 = vmatprep.subr.mxu0 0.0
    %309 = vmatpush1.msra.mxu0 0.0
    %310 = vmatprep.subr.mxu0 0.0
    %311 = vmatpush1.msra.mxu0 0.0
    %312 = vmatprep.subr.mxu0 0.0
    %313 = vmatpush1.msra.mxu0 0.0
    %314 = vmatprep.subr.mxu0 0.0
    %315 = vmatpush1.msra.mxu0 0.0
    %316 = vmatprep.subr.mxu0 0.0
    %317 = vmatpush1.msra.mxu0 0.0
    %318 = vmatprep.subr.mxu0 0.0
    %319 = vmatpush1.msra.mxu0 0.0
    %320 = vmatprep.subr.mxu0 0.0
    %321 = vmatpush1.msra.mxu0 0.0
    %322 = vmatprep.subr.mxu0 0.0
    %323 = vmatpush1.msra.mxu0 0.0
    %324 = vmatprep.subr.mxu0 0.0
    %325 = vmatpush1.msra.mxu0 0.0
    %326 = vmatprep.subr.mxu0 0.0
    %327 = vmatpush1.msra.mxu0 0.0
    %328 = vmatprep.subr.mxu0 0.0
    %329 = vmatpush1.msra.mxu0 0.0
    %330 = vmatprep.subr.mxu0 0.0
    %331 = vmatpush1.msra.mxu0 0.0
    %332 = vmatprep.subr.mxu0 0.0
    %333 = vmatpush1.msra.mxu0 0.0
    %334 = vmatprep.subr.mxu0 0.0
    %335 = vmatpush1.msra.mxu0 0.0
    %336 = vmatprep.mubr.f32.mxu0 0.0
    %v337 = vand.u32 %v98, 4294901760
    %338 = vmatmul.mubr.f32.gmra.mrb[0].mxu0 %v337
    %v339 = vpop.f32.mrb[0].mxu0
    %v340 = vadd.f32 %v188, %v339
    %v341 = vpop.f32.mrb[0].mxu0
    %v342 = vadd.f32 %v190, %v341
    %343 = vdwg.mxu0
    %v344 = vand.u32 %v43, 4294901760
    %v345 = vsub.f32 %v43, %v344
    %346 = vmatprep.subr.mxu0 %v345
    %v347 = vand.u32 %v42, 4294901760
    %v348 = vsub.f32 %v42, %v347
    %349 = vmatpush1.msra.mxu0 %v348
    %v350 = vand.u32 %v47, 4294901760
    %v351 = vsub.f32 %v47, %v350
    %352 = vmatprep.subr.mxu0 %v351
    %v353 = vand.u32 %v46, 4294901760
    %v354 = vsub.f32 %v46, %v353
    %355 = vmatpush1.msra.mxu0 %v354
    %v356 = vand.u32 %v51, 4294901760
    %v357 = vsub.f32 %v51, %v356
    %358 = vmatprep.subr.mxu0 %v357
    %v359 = vand.u32 %v50, 4294901760
    %v360 = vsub.f32 %v50, %v359
    %361 = vmatpush1.msra.mxu0 %v360
    %v362 = vand.u32 %v55, 4294901760
    %v363 = vsub.f32 %v55, %v362
    %364 = vmatprep.subr.mxu0 %v363
    %v365 = vand.u32 %v54, 4294901760
    %v366 = vsub.f32 %v54, %v365
    %367 = vmatpush1.msra.mxu0 %v366
    %v368 = vand.u32 %v59, 4294901760
    %v369 = vsub.f32 %v59, %v368
    %370 = vmatprep.subr.mxu0 %v369
    %v371 = vand.u32 %v58, 4294901760
    %v372 = vsub.f32 %v58, %v371
    %373 = vmatpush1.msra.mxu0 %v372
    %v374 = vand.u32 %v63, 4294901760
    %v375 = vsub.f32 %v63, %v374
    %376 = vmatprep.subr.mxu0 %v375
    %v377 = vand.u32 %v62, 4294901760
    %v378 = vsub.f32 %v62, %v377
    %379 = vmatpush1.msra.mxu0 %v378
    %v380 = vand.u32 %v67, 4294901760
    %v381 = vsub.f32 %v67, %v380
    %382 = vmatprep.subr.mxu0 %v381
    %v383 = vand.u32 %v66, 4294901760
    %v384 = vsub.f32 %v66, %v383
    %385 = vmatpush1.msra.mxu0 %v384
    %v386 = vand.u32 %v71, 4294901760
    %v387 = vsub.f32 %v71, %v386
    %388 = vmatprep.subr.mxu0 %v387
    %v389 = vand.u32 %v70, 4294901760
    %v390 = vsub.f32 %v70, %v389
    %391 = vmatpush1.msra.mxu0 %v390
    %392 = vmatprep.subr.mxu0 0.0
    %393 = vmatpush1.msra.mxu0 0.0
    %394 = vmatprep.subr.mxu0 0.0
    %395 = vmatpush1.msra.mxu0 0.0
    %396 = vmatprep.subr.mxu0 0.0
    %397 = vmatpush1.msra.mxu0 0.0
    %398 = vmatprep.subr.mxu0 0.0
    %399 = vmatpush1.msra.mxu0 0.0
    %400 = vmatprep.subr.mxu0 0.0
    %401 = vmatpush1.msra.mxu0 0.0
    %402 = vmatprep.subr.mxu0 0.0
    %403 = vmatpush1.msra.mxu0 0.0
    %404 = vmatprep.subr.mxu0 0.0
    %405 = vmatpush1.msra.mxu0 0.0
    %406 = vmatprep.subr.mxu0 0.0
    %407 = vmatpush1.msra.mxu0 0.0
    %408 = vmatprep.subr.mxu0 0.0
    %409 = vmatpush1.msra.mxu0 0.0
    %410 = vmatprep.subr.mxu0 0.0
    %411 = vmatpush1.msra.mxu0 0.0
    %412 = vmatprep.subr.mxu0 0.0
    %413 = vmatpush1.msra.mxu0 0.0
    %414 = vmatprep.subr.mxu0 0.0
    %415 = vmatpush1.msra.mxu0 0.0
    %416 = vmatprep.subr.mxu0 0.0
    %417 = vmatpush1.msra.mxu0 0.0
    %418 = vmatprep.subr.mxu0 0.0
    %419 = vmatpush1.msra.mxu0 0.0
    %420 = vmatprep.subr.mxu0 0.0
    %421 = vmatpush1.msra.mxu0 0.0
    %422 = vmatprep.subr.mxu0 0.0
    %423 = vmatpush1.msra.mxu0 0.0
    %424 = vmatprep.subr.mxu0 0.0
    %425 = vmatpush1.msra.mxu0 0.0
    %426 = vmatprep.subr.mxu0 0.0
    %427 = vmatpush1.msra.mxu0 0.0
    %428 = vmatprep.subr.mxu0 0.0
    %429 = vmatpush1.msra.mxu0 0.0
    %430 = vmatprep.subr.mxu0 0.0
    %431 = vmatpush1.msra.mxu0 0.0
    %432 = vmatprep.subr.mxu0 0.0
    %433 = vmatpush1.msra.mxu0 0.0
    %434 = vmatprep.subr.mxu0 0.0
    %435 = vmatpush1.msra.mxu0 0.0
    %436 = vmatprep.subr.mxu0 0.0
    %437 = vmatpush1.msra.mxu0 0.0
    %438 = vmatprep.subr.mxu0 0.0
    %439 = vmatpush1.msra.mxu0 0.0
    %440 = vmatprep.mubr.f32.mxu0 0.0
    %v441 = vand.u32 %v98, 4294901760
    %v442 = vsub.f32 %v98, %v441
    %443 = vmatmul.mubr.f32.gmra.mrb[0].mxu0 %v442
    %v444 = vpop.f32.mrb[0].mxu0
    %v445 = vadd.f32 %v340, %v444
    %v446 = vpop.f32.mrb[0].mxu0
    %v447 = vadd.f32 %v342, %v446
    %448 = vdwg.mxu0
    %v449 = vand.u32 %v43, 4294901760
    %450 = vmatprep.subr.mxu0 %v449
    %v451 = vand.u32 %v42, 4294901760
    %452 = vmatpush1.msra.mxu0 %v451
    %v453 = vand.u32 %v47, 4294901760
    %454 = vmatprep.subr.mxu0 %v453
    %v455 = vand.u32 %v46, 4294901760
    %456 = vmatpush1.msra.mxu0 %v455
    %v457 = vand.u32 %v51, 4294901760
    %458 = vmatprep.subr.mxu0 %v457
    %v459 = vand.u32 %v50, 4294901760
    %460 = vmatpush1.msra.mxu0 %v459
    %v461 = vand.u32 %v55, 4294901760
    %462 = vmatprep.subr.mxu0 %v461
    %v463 = vand.u32 %v54, 4294901760
    %464 = vmatpush1.msra.mxu0 %v463
    %v465 = vand.u32 %v59, 4294901760
    %466 = vmatprep.subr.mxu0 %v465
    %v467 = vand.u32 %v58, 4294901760
    %468 = vmatpush1.msra.mxu0 %v467
    %v469 = vand.u32 %v63, 4294901760
    %470 = vmatprep.subr.mxu0 %v469
    %v471 = vand.u32 %v62, 4294901760
    %472 = vmatpush1.msra.mxu0 %v471
    %v473 = vand.u32 %v67, 4294901760
    %474 = vmatprep.subr.mxu0 %v473
    %v475 = vand.u32 %v66, 4294901760
    %476 = vmatpush1.msra.mxu0 %v475
    %v477 = vand.u32 %v71, 4294901760
    %478 = vmatprep.subr.mxu0 %v477
    %v479 = vand.u32 %v70, 4294901760
    %480 = vmatpush1.msra.mxu0 %v479
    %481 = vmatprep.subr.mxu0 0.0
    %482 = vmatpush1.msra.mxu0 0.0
    %483 = vmatprep.subr.mxu0 0.0
    %484 = vmatpush1.msra.mxu0 0.0
    %485 = vmatprep.subr.mxu0 0.0
    %486 = vmatpush1.msra.mxu0 0.0
    %487 = vmatprep.subr.mxu0 0.0
    %488 = vmatpush1.msra.mxu0 0.0
    %489 = vmatprep.subr.mxu0 0.0
    %490 = vmatpush1.msra.mxu0 0.0
    %491 = vmatprep.subr.mxu0 0.0
    %492 = vmatpush1.msra.mxu0 0.0
    %493 = vmatprep.subr.mxu0 0.0
    %494 = vmatpush1.msra.mxu0 0.0
    %495 = vmatprep.subr.mxu0 0.0
    %496 = vmatpush1.msra.mxu0 0.0
    %497 = vmatprep.subr.mxu0 0.0
    %498 = vmatpush1.msra.mxu0 0.0
    %499 = vmatprep.subr.mxu0 0.0
    %500 = vmatpush1.msra.mxu0 0.0
    %501 = vmatprep.subr.mxu0 0.0
    %502 = vmatpush1.msra.mxu0 0.0
    %503 = vmatprep.subr.mxu0 0.0
    %504 = vmatpush1.msra.mxu0 0.0
    %505 = vmatprep.subr.mxu0 0.0
    %506 = vmatpush1.msra.mxu0 0.0
    %507 = vmatprep.subr.mxu0 0.0
    %508 = vmatpush1.msra.mxu0 0.0
    %509 = vmatprep.subr.mxu0 0.0
    %510 = vmatpush1.msra.mxu0 0.0
    %511 = vmatprep.subr.mxu0 0.0
    %512 = vmatpush1.msra.mxu0 0.0
    %513 = vmatprep.subr.mxu0 0.0
    %514 = vmatpush1.msra.mxu0 0.0
    %515 = vmatprep.subr.mxu0 0.0
    %516 = vmatpush1.msra.mxu0 0.0
    %517 = vmatprep.subr.mxu0 0.0
    %518 = vmatpush1.msra.mxu0 0.0
    %519 = vmatprep.subr.mxu0 0.0
    %520 = vmatpush1.msra.mxu0 0.0
    %521 = vmatprep.subr.mxu0 0.0
    %522 = vmatpush1.msra.mxu0 0.0
    %523 = vmatprep.subr.mxu0 0.0
    %524 = vmatpush1.msra.mxu0 0.0
    %525 = vmatprep.subr.mxu0 0.0
    %526 = vmatpush1.msra.mxu0 0.0
    %527 = vmatprep.subr.mxu0 0.0
    %528 = vmatpush1.msra.mxu0 0.0
    %529 = vmatprep.mubr.f32.mxu0 0.0
    %v530 = vand.u32 %v98, 4294901760
    %v531 = vsub.f32 %v98, %v530
    %v532 = vand.u32 %v531, 4294901760
    %533 = vmatmul.mubr.f32.gmra.mrb[0].mxu0 %v532
    %v534 = vpop.f32.mrb[0].mxu0
    %v535 = vadd.f32 %v445, %v534
    %v536 = vpop.f32.mrb[0].mxu0
    %v537 = vadd.f32 %v447, %v536
    %538 = vdwg.mxu0
    %v539 = vand.u32 %v43, 4294901760
    %v540 = vsub.f32 %v43, %v539
    %v541 = vand.u32 %v540, 4294901760
    %542 = vmatprep.subr.mxu0 %v541
    %v543 = vand.u32 %v42, 4294901760
    %v544 = vsub.f32 %v42, %v543
    %v545 = vand.u32 %v544, 4294901760
    %546 = vmatpush1.msra.mxu0 %v545
    %v547 = vand.u32 %v47, 4294901760
    %v548 = vsub.f32 %v47, %v547
    %v549 = vand.u32 %v548, 4294901760
    %550 = vmatprep.subr.mxu0 %v549
    %v551 = vand.u32 %v46, 4294901760
    %v552 = vsub.f32 %v46, %v551
    %v553 = vand.u32 %v552, 4294901760
    %554 = vmatpush1.msra.mxu0 %v553
    %v555 = vand.u32 %v51, 4294901760
    %v556 = vsub.f32 %v51, %v555
    %v557 = vand.u32 %v556, 4294901760
    %558 = vmatprep.subr.mxu0 %v557
    %v559 = vand.u32 %v50, 4294901760
    %v560 = vsub.f32 %v50, %v559
    %v561 = vand.u32 %v560, 4294901760
    %562 = vmatpush1.msra.mxu0 %v561
    %v563 = vand.u32 %v55, 4294901760
    %v564 = vsub.f32 %v55, %v563
    %v565 = vand.u32 %v564, 4294901760
    %566 = vmatprep.subr.mxu0 %v565
    %v567 = vand.u32 %v54, 4294901760
    %v568 = vsub.f32 %v54, %v567
    %v569 = vand.u32 %v568, 4294901760
    %570 = vmatpush1.msra.mxu0 %v569
    %v571 = vand.u32 %v59, 4294901760
    %v572 = vsub.f32 %v59, %v571
    %v573 = vand.u32 %v572, 4294901760
    %574 = vmatprep.subr.mxu0 %v573
    %v575 = vand.u32 %v58, 4294901760
    %v576 = vsub.f32 %v58, %v575
    %v577 = vand.u32 %v576, 4294901760
    %578 = vmatpush1.msra.mxu0 %v577
    %v579 = vand.u32 %v63, 4294901760
    %v580 = vsub.f32 %v63, %v579
    %v581 = vand.u32 %v580, 4294901760
    %582 = vmatprep.subr.mxu0 %v581
    %v583 = vand.u32 %v62, 4294901760
    %v584 = vsub.f32 %v62, %v583
    %v585 = vand.u32 %v584, 4294901760
    %586 = vmatpush1.msra.mxu0 %v585
    %v587 = vand.u32 %v67, 4294901760
    %v588 = vsub.f32 %v67, %v587
    %v589 = vand.u32 %v588, 4294901760
    %590 = vmatprep.subr.mxu0 %v589
    %v591 = vand.u32 %v66, 4294901760
    %v592 = vsub.f32 %v66, %v591
    %v593 = vand.u32 %v592, 4294901760
    %594 = vmatpush1.msra.mxu0 %v593
    %v595 = vand.u32 %v71, 4294901760
    %v596 = vsub.f32 %v71, %v595
    %v597 = vand.u32 %v596, 4294901760
    %598 = vmatprep.subr.mxu0 %v597
    %v599 = vand.u32 %v70, 4294901760
    %v600 = vsub.f32 %v70, %v599
    %v601 = vand.u32 %v600, 4294901760
    %602 = vmatpush1.msra.mxu0 %v601
    %603 = vmatprep.subr.mxu0 0.0
    %604 = vmatpush1.msra.mxu0 0.0
    %605 = vmatprep.subr.mxu0 0.0
    %606 = vmatpush1.msra.mxu0 0.0
    %607 = vmatprep.subr.mxu0 0.0
    %608 = vmatpush1.msra.mxu0 0.0
    %609 = vmatprep.subr.mxu0 0.0
    %610 = vmatpush1.msra.mxu0 0.0
    %611 = vmatprep.subr.mxu0 0.0
    %612 = vmatpush1.msra.mxu0 0.0
    %613 = vmatprep.subr.mxu0 0.0
    %614 = vmatpush1.msra.mxu0 0.0
    %615 = vmatprep.subr.mxu0 0.0
    %616 = vmatpush1.msra.mxu0 0.0
    %617 = vmatprep.subr.mxu0 0.0
    %618 = vmatpush1.msra.mxu0 0.0
    %619 = vmatprep.subr.mxu0 0.0
    %620 = vmatpush1.msra.mxu0 0.0
    %621 = vmatprep.subr.mxu0 0.0
    %622 = vmatpush1.msra.mxu0 0.0
    %623 = vmatprep.subr.mxu0 0.0
    %624 = vmatpush1.msra.mxu0 0.0
    %625 = vmatprep.subr.mxu0 0.0
    %626 = vmatpush1.msra.mxu0 0.0
    %627 = vmatprep.subr.mxu0 0.0
    %628 = vmatpush1.msra.mxu0 0.0
    %629 = vmatprep.subr.mxu0 0.0
    %630 = vmatpush1.msra.mxu0 0.0
    %631 = vmatprep.subr.mxu0 0.0
    %632 = vmatpush1.msra.mxu0 0.0
    %633 = vmatprep.subr.mxu0 0.0
    %634 = vmatpush1.msra.mxu0 0.0
    %635 = vmatprep.subr.mxu0 0.0
    %636 = vmatpush1.msra.mxu0 0.0
    %637 = vmatprep.subr.mxu0 0.0
    %638 = vmatpush1.msra.mxu0 0.0
    %639 = vmatprep.subr.mxu0 0.0
    %640 = vmatpush1.msra.mxu0 0.0
    %641 = vmatprep.subr.mxu0 0.0
    %642 = vmatpush1.msra.mxu0 0.0
    %643 = vmatprep.subr.mxu0 0.0
    %644 = vmatpush1.msra.mxu0 0.0
    %645 = vmatprep.subr.mxu0 0.0
    %646 = vmatpush1.msra.mxu0 0.0
    %647 = vmatprep.subr.mxu0 0.0
    %648 = vmatpush1.msra.mxu0 0.0
    %649 = vmatprep.subr.mxu0 0.0
    %650 = vmatpush1.msra.mxu0 0.0
    %651 = vmatprep.mubr.f32.mxu0 0.0
    %v652 = vand.u32 %v98, 4294901760
    %653 = vmatmul.mubr.f32.gmra.mrb[0].mxu0 %v652
    %v654 = vpop.f32.mrb[0].mxu0
    %v655 = vadd.f32 %v535, %v654
    %v656 = vpop.f32.mrb[0].mxu0
    %v657 = vadd.f32 %v537, %v656
    %658 = vdwg.mxu0
    %v659 = vand.u32 %v43, 4294901760
    %660 = vmatprep.subr.mxu0 %v659
    %v661 = vand.u32 %v42, 4294901760
    %662 = vmatpush1.msra.mxu0 %v661
    %v663 = vand.u32 %v47, 4294901760
    %664 = vmatprep.subr.mxu0 %v663
    %v665 = vand.u32 %v46, 4294901760
    %666 = vmatpush1.msra.mxu0 %v665
    %v667 = vand.u32 %v51, 4294901760
    %668 = vmatprep.subr.mxu0 %v667
    %v669 = vand.u32 %v50, 4294901760
    %670 = vmatpush1.msra.mxu0 %v669
    %v671 = vand.u32 %v55, 4294901760
    %672 = vmatprep.subr.mxu0 %v671
    %v673 = vand.u32 %v54, 4294901760
    %674 = vmatpush1.msra.mxu0 %v673
    %v675 = vand.u32 %v59, 4294901760
    %676 = vmatprep.subr.mxu0 %v675
    %v677 = vand.u32 %v58, 4294901760
    %678 = vmatpush1.msra.mxu0 %v677
    %v679 = vand.u32 %v63, 4294901760
    %680 = vmatprep.subr.mxu0 %v679
    %v681 = vand.u32 %v62, 4294901760
    %682 = vmatpush1.msra.mxu0 %v681
    %v683 = vand.u32 %v67, 4294901760
    %684 = vmatprep.subr.mxu0 %v683
    %v685 = vand.u32 %v66, 4294901760
    %686 = vmatpush1.msra.mxu0 %v685
    %v687 = vand.u32 %v71, 4294901760
    %688 = vmatprep.subr.mxu0 %v687
    %v689 = vand.u32 %v70, 4294901760
    %690 = vmatpush1.msra.mxu0 %v689
    %691 = vmatprep.subr.mxu0 0.0
    %692 = vmatpush1.msra.mxu0 0.0
    %693 = vmatprep.subr.mxu0 0.0
    %694 = vmatpush1.msra.mxu0 0.0
    %695 = vmatprep.subr.mxu0 0.0
    %696 = vmatpush1.msra.mxu0 0.0
    %697 = vmatprep.subr.mxu0 0.0
    %698 = vmatpush1.msra.mxu0 0.0
    %699 = vmatprep.subr.mxu0 0.0
    %700 = vmatpush1.msra.mxu0 0.0
    %701 = vmatprep.subr.mxu0 0.0
    %702 = vmatpush1.msra.mxu0 0.0
    %703 = vmatprep.subr.mxu0 0.0
    %704 = vmatpush1.msra.mxu0 0.0
    %705 = vmatprep.subr.mxu0 0.0
    %706 = vmatpush1.msra.mxu0 0.0
    %707 = vmatprep.subr.mxu0 0.0
    %708 = vmatpush1.msra.mxu0 0.0
    %709 = vmatprep.subr.mxu0 0.0
    %710 = vmatpush1.msra.mxu0 0.0
    %711 = vmatprep.subr.mxu0 0.0
    %712 = vmatpush1.msra.mxu0 0.0
    %713 = vmatprep.subr.mxu0 0.0
    %714 = vmatpush1.msra.mxu0 0.0
    %715 = vmatprep.subr.mxu0 0.0
    %716 = vmatpush1.msra.mxu0 0.0
    %717 = vmatprep.subr.mxu0 0.0
    %718 = vmatpush1.msra.mxu0 0.0
    %719 = vmatprep.subr.mxu0 0.0
    %720 = vmatpush1.msra.mxu0 0.0
    %721 = vmatprep.subr.mxu0 0.0
    %722 = vmatpush1.msra.mxu0 0.0
    %723 = vmatprep.subr.mxu0 0.0
    %724 = vmatpush1.msra.mxu0 0.0
    %725 = vmatprep.subr.mxu0 0.0
    %726 = vmatpush1.msra.mxu0 0.0
    %727 = vmatprep.subr.mxu0 0.0
    %728 = vmatpush1.msra.mxu0 0.0
    %729 = vmatprep.subr.mxu0 0.0
    %730 = vmatpush1.msra.mxu0 0.0
    %731 = vmatprep.subr.mxu0 0.0
    %732 = vmatpush1.msra.mxu0 0.0
    %733 = vmatprep.subr.mxu0 0.0
    %734 = vmatpush1.msra.mxu0 0.0
    %735 = vmatprep.subr.mxu0 0.0
    %736 = vmatpush1.msra.mxu0 0.0
    %737 = vmatprep.subr.mxu0 0.0
    %738 = vmatpush1.msra.mxu0 0.0
    %739 = vmatprep.mubr.f32.mxu0 0.0
    %v740 = vand.u32 %v98, 4294901760
    %741 = vmatmul.mubr.f32.gmra.mrb[0].mxu0 %v740
    %v742 = vpop.f32.mrb[0].mxu0
    %v743 = vadd.f32 %v655, %v742
    %v744 = vpop.f32.mrb[0].mxu0
    %v745 = vadd.f32 %v657, %v744
    %746 = vdwg.mxu0
    %v747 = vand.u32 %v45, 4294901760
    %748 = vmatprep.subr.mxu0 %v747
    %v749 = vand.u32 %v44, 4294901760
    %750 = vmatpush1.msra.mxu0 %v749
    %v751 = vand.u32 %v49, 4294901760
    %752 = vmatprep.subr.mxu0 %v751
    %v753 = vand.u32 %v48, 4294901760
    %754 = vmatpush1.msra.mxu0 %v753
    %v755 = vand.u32 %v53, 4294901760
    %756 = vmatprep.subr.mxu0 %v755
    %v757 = vand.u32 %v52, 4294901760
    %758 = vmatpush1.msra.mxu0 %v757
    %v759 = vand.u32 %v57, 4294901760
    %760 = vmatprep.subr.mxu0 %v759
    %v761 = vand.u32 %v56, 4294901760
    %762 = vmatpush1.msra.mxu0 %v761
    %v763 = vand.u32 %v61, 4294901760
    %764 = vmatprep.subr.mxu0 %v763
    %v765 = vand.u32 %v60, 4294901760
    %766 = vmatpush1.msra.mxu0 %v765
    %v767 = vand.u32 %v65, 4294901760
    %768 = vmatprep.subr.mxu0 %v767
    %v769 = vand.u32 %v64, 4294901760
    %770 = vmatpush1.msra.mxu0 %v769
    %v771 = vand.u32 %v69, 4294901760
    %772 = vmatprep.subr.mxu0 %v771
    %v773 = vand.u32 %v68, 4294901760
    %774 = vmatpush1.msra.mxu0 %v773
    %v775 = vand.u32 %v73, 4294901760
    %776 = vmatprep.subr.mxu0 %v775
    %v777 = vand.u32 %v72, 4294901760
    %778 = vmatpush1.msra.mxu0 %v777
    %779 = vmatprep.subr.mxu0 0.0
    %780 = vmatpush1.msra.mxu0 0.0
    %781 = vmatprep.subr.mxu0 0.0
    %782 = vmatpush1.msra.mxu0 0.0
    %783 = vmatprep.subr.mxu0 0.0
    %784 = vmatpush1.msra.mxu0 0.0
    %785 = vmatprep.subr.mxu0 0.0
    %786 = vmatpush1.msra.mxu0 0.0
    %787 = vmatprep.subr.mxu0 0.0
    %788 = vmatpush1.msra.mxu0 0.0
    %789 = vmatprep.subr.mxu0 0.0
    %790 = vmatpush1.msra.mxu0 0.0
    %791 = vmatprep.subr.mxu0 0.0
    %792 = vmatpush1.msra.mxu0 0.0
    %793 = vmatprep.subr.mxu0 0.0
    %794 = vmatpush1.msra.mxu0 0.0
    %795 = vmatprep.subr.mxu0 0.0
    %796 = vmatpush1.msra.mxu0 0.0
    %797 = vmatprep.subr.mxu0 0.0
    %798 = vmatpush1.msra.mxu0 0.0
    %799 = vmatprep.subr.mxu0 0.0
    %800 = vmatpush1.msra.mxu0 0.0
    %801 = vmatprep.subr.mxu0 0.0
    %802 = vmatpush1.msra.mxu0 0.0
    %803 = vmatprep.subr.mxu0 0.0
    %804 = vmatpush1.msra.mxu0 0.0
    %805 = vmatprep.subr.mxu0 0.0
    %806 = vmatpush1.msra.mxu0 0.0
    %807 = vmatprep.subr.mxu0 0.0
    %808 = vmatpush1.msra.mxu0 0.0
    %809 = vmatprep.subr.mxu0 0.0
    %810 = vmatpush1.msra.mxu0 0.0
    %811 = vmatprep.subr.mxu0 0.0
    %812 = vmatpush1.msra.mxu0 0.0
    %813 = vmatprep.subr.mxu0 0.0
    %814 = vmatpush1.msra.mxu0 0.0
    %815 = vmatprep.subr.mxu0 0.0
    %816 = vmatpush1.msra.mxu0 0.0
    %817 = vmatprep.subr.mxu0 0.0
    %818 = vmatpush1.msra.mxu0 0.0
    %819 = vmatprep.subr.mxu0 0.0
    %820 = vmatpush1.msra.mxu0 0.0
    %821 = vmatprep.subr.mxu0 0.0
    %822 = vmatpush1.msra.mxu0 0.0
    %823 = vmatprep.subr.mxu0 0.0
    %824 = vmatpush1.msra.mxu0 0.0
    %825 = vmatprep.subr.mxu0 0.0
    %826 = vmatpush1.msra.mxu0 0.0
    %827 = vmatprep.mubr.f32.mxu0 0.0
    %v828 = vand.u32 %v98, 4294901760
    %v829 = vsub.f32 %v98, %v828
    %v830 = vand.u32 %v829, 4294901760
    %v831 = vsub.f32 %v829, %v830
    %v832 = vand.u32 %v831, 4294901760
    %833 = vmatmul.mubr.f32.gmra.mrb[0].mxu0 %v832
    %v834 = vpop.f32.mrb[0].mxu0
    %v835 = vadd.f32 %v87, %v834
    %v836 = vpop.f32.mrb[0].mxu0
    %v837 = vadd.f32 %v91, %v836
    %838 = vdwg.mxu0
    %v839 = vand.u32 %v45, 4294901760
    %v840 = vsub.f32 %v45, %v839
    %v841 = vand.u32 %v840, 4294901760
    %v842 = vsub.f32 %v840, %v841
    %v843 = vand.u32 %v842, 4294901760
    %844 = vmatprep.subr.mxu0 %v843
    %v845 = vand.u32 %v44, 4294901760
    %v846 = vsub.f32 %v44, %v845
    %v847 = vand.u32 %v846, 4294901760
    %v848 = vsub.f32 %v846, %v847
    %v849 = vand.u32 %v848, 4294901760
    %850 = vmatpush1.msra.mxu0 %v849
    %v851 = vand.u32 %v49, 4294901760
    %v852 = vsub.f32 %v49, %v851
    %v853 = vand.u32 %v852, 4294901760
    %v854 = vsub.f32 %v852, %v853
    %v855 = vand.u32 %v854, 4294901760
    %856 = vmatprep.subr.mxu0 %v855
    %v857 = vand.u32 %v48, 4294901760
    %v858 = vsub.f32 %v48, %v857
    %v859 = vand.u32 %v858, 4294901760
    %v860 = vsub.f32 %v858, %v859
    %v861 = vand.u32 %v860, 4294901760
    %862 = vmatpush1.msra.mxu0 %v861
    %v863 = vand.u32 %v53, 4294901760
    %v864 = vsub.f32 %v53, %v863
    %v865 = vand.u32 %v864, 4294901760
    %v866 = vsub.f32 %v864, %v865
    %v867 = vand.u32 %v866, 4294901760
    %868 = vmatprep.subr.mxu0 %v867
    %v869 = vand.u32 %v52, 4294901760
    %v870 = vsub.f32 %v52, %v869
    %v871 = vand.u32 %v870, 4294901760
    %v872 = vsub.f32 %v870, %v871
    %v873 = vand.u32 %v872, 4294901760
    %874 = vmatpush1.msra.mxu0 %v873
    %v875 = vand.u32 %v57, 4294901760
    %v876 = vsub.f32 %v57, %v875
    %v877 = vand.u32 %v876, 4294901760
    %v878 = vsub.f32 %v876, %v877
    %v879 = vand.u32 %v878, 4294901760
    %880 = vmatprep.subr.mxu0 %v879
    %v881 = vand.u32 %v56, 4294901760
    %v882 = vsub.f32 %v56, %v881
    %v883 = vand.u32 %v882, 4294901760
    %v884 = vsub.f32 %v882, %v883
    %v885 = vand.u32 %v884, 4294901760
    %886 = vmatpush1.msra.mxu0 %v885
    %v887 = vand.u32 %v61, 4294901760
    %v888 = vsub.f32 %v61, %v887
    %v889 = vand.u32 %v888, 4294901760
    %v890 = vsub.f32 %v888, %v889
    %v891 = vand.u32 %v890, 4294901760
    %892 = vmatprep.subr.mxu0 %v891
    %v893 = vand.u32 %v60, 4294901760
    %v894 = vsub.f32 %v60, %v893
    %v895 = vand.u32 %v894, 4294901760
    %v896 = vsub.f32 %v894, %v895
    %v897 = vand.u32 %v896, 4294901760
    %898 = vmatpush1.msra.mxu0 %v897
    %v899 = vand.u32 %v65, 4294901760
    %v900 = vsub.f32 %v65, %v899
    %v901 = vand.u32 %v900, 4294901760
    %v902 = vsub.f32 %v900, %v901
    %v903 = vand.u32 %v902, 4294901760
    %904 = vmatprep.subr.mxu0 %v903
    %v905 = vand.u32 %v64, 4294901760
    %v906 = vsub.f32 %v64, %v905
    %v907 = vand.u32 %v906, 4294901760
    %v908 = vsub.f32 %v906, %v907
    %v909 = vand.u32 %v908, 4294901760
    %910 = vmatpush1.msra.mxu0 %v909
    %v911 = vand.u32 %v69, 4294901760
    %v912 = vsub.f32 %v69, %v911
    %v913 = vand.u32 %v912, 4294901760
    %v914 = vsub.f32 %v912, %v913
    %v915 = vand.u32 %v914, 4294901760
    %916 = vmatprep.subr.mxu0 %v915
    %v917 = vand.u32 %v68, 4294901760
    %v918 = vsub.f32 %v68, %v917
    %v919 = vand.u32 %v918, 4294901760
    %v920 = vsub.f32 %v918, %v919
    %v921 = vand.u32 %v920, 4294901760
    %922 = vmatpush1.msra.mxu0 %v921
    %v923 = vand.u32 %v73, 4294901760
    %v924 = vsub.f32 %v73, %v923
    %v925 = vand.u32 %v924, 4294901760
    %v926 = vsub.f32 %v924, %v925
    %v927 = vand.u32 %v926, 4294901760
    %928 = vmatprep.subr.mxu0 %v927
    %v929 = vand.u32 %v72, 4294901760
    %v930 = vsub.f32 %v72, %v929
    %v931 = vand.u32 %v930, 4294901760
    %v932 = vsub.f32 %v930, %v931
    %v933 = vand.u32 %v932, 4294901760
    %934 = vmatpush1.msra.mxu0 %v933
    %935 = vmatprep.subr.mxu0 0.0
    %936 = vmatpush1.msra.mxu0 0.0
    %937 = vmatprep.subr.mxu0 0.0
    %938 = vmatpush1.msra.mxu0 0.0
    %939 = vmatprep.subr.mxu0 0.0
    %940 = vmatpush1.msra.mxu0 0.0
    %941 = vmatprep.subr.mxu0 0.0
    %942 = vmatpush1.msra.mxu0 0.0
    %943 = vmatprep.subr.mxu0 0.0
    %944 = vmatpush1.msra.mxu0 0.0
    %945 = vmatprep.subr.mxu0 0.0
    %946 = vmatpush1.msra.mxu0 0.0
    %947 = vmatprep.subr.mxu0 0.0
    %948 = vmatpush1.msra.mxu0 0.0
    %949 = vmatprep.subr.mxu0 0.0
    %950 = vmatpush1.msra.mxu0 0.0
    %951 = vmatprep.subr.mxu0 0.0
    %952 = vmatpush1.msra.mxu0 0.0
    %953 = vmatprep.subr.mxu0 0.0
    %954 = vmatpush1.msra.mxu0 0.0
    %955 = vmatprep.subr.mxu0 0.0
    %956 = vmatpush1.msra.mxu0 0.0
    %957 = vmatprep.subr.mxu0 0.0
    %958 = vmatpush1.msra.mxu0 0.0
    %959 = vmatprep.subr.mxu0 0.0
    %960 = vmatpush1.msra.mxu0 0.0
    %961 = vmatprep.subr.mxu0 0.0
    %962 = vmatpush1.msra.mxu0 0.0
    %963 = vmatprep.subr.mxu0 0.0
    %964 = vmatpush1.msra.mxu0 0.0
    %965 = vmatprep.subr.mxu0 0.0
    %966 = vmatpush1.msra.mxu0 0.0
    %967 = vmatprep.subr.mxu0 0.0
    %968 = vmatpush1.msra.mxu0 0.0
    %969 = vmatprep.subr.mxu0 0.0
    %970 = vmatpush1.msra.mxu0 0.0
    %971 = vmatprep.subr.mxu0 0.0
    %972 = vmatpush1.msra.mxu0 0.0
    %973 = vmatprep.subr.mxu0 0.0
    %974 = vmatpush1.msra.mxu0 0.0
    %975 = vmatprep.subr.mxu0 0.0
    %976 = vmatpush1.msra.mxu0 0.0
    %977 = vmatprep.subr.mxu0 0.0
    %978 = vmatpush1.msra.mxu0 0.0
    %979 = vmatprep.subr.mxu0 0.0
    %980 = vmatpush1.msra.mxu0 0.0
    %981 = vmatprep.subr.mxu0 0.0
    %982 = vmatpush1.msra.mxu0 0.0
    %983 = vmatprep.mubr.f32.mxu0 0.0
    %v984 = vand.u32 %v98, 4294901760
    %985 = vmatmul.mubr.f32.gmra.mrb[0].mxu0 %v984
    %v986 = vpop.f32.mrb[0].mxu0
    %v987 = vadd.f32 %v835, %v986
    %v988 = vpop.f32.mrb[0].mxu0
    %v989 = vadd.f32 %v837, %v988
    %990 = vdwg.mxu0
    %v991 = vand.u32 %v45, 4294901760
    %v992 = vsub.f32 %v45, %v991
    %993 = vmatprep.subr.mxu0 %v992
    %v994 = vand.u32 %v44, 4294901760
    %v995 = vsub.f32 %v44, %v994
    %996 = vmatpush1.msra.mxu0 %v995
    %v997 = vand.u32 %v49, 4294901760
    %v998 = vsub.f32 %v49, %v997
    %999 = vmatprep.subr.mxu0 %v998
    %v1000 = vand.u32 %v48, 4294901760
    %v1001 = vsub.f32 %v48, %v1000
    %1002 = vmatpush1.msra.mxu0 %v1001
    %v1003 = vand.u32 %v53, 4294901760
    %v1004 = vsub.f32 %v53, %v1003
    %1005 = vmatprep.subr.mxu0 %v1004
    %v1006 = vand.u32 %v52, 4294901760
    %v1007 = vsub.f32 %v52, %v1006
    %1008 = vmatpush1.msra.mxu0 %v1007
    %v1009 = vand.u32 %v57, 4294901760
    %v1010 = vsub.f32 %v57, %v1009
    %1011 = vmatprep.subr.mxu0 %v1010
    %v1012 = vand.u32 %v56, 4294901760
    %v1013 = vsub.f32 %v56, %v1012
    %1014 = vmatpush1.msra.mxu0 %v1013
    %v1015 = vand.u32 %v61, 4294901760
    %v1016 = vsub.f32 %v61, %v1015
    %1017 = vmatprep.subr.mxu0 %v1016
    %v1018 = vand.u32 %v60, 4294901760
    %v1019 = vsub.f32 %v60, %v1018
    %1020 = vmatpush1.msra.mxu0 %v1019
    %v1021 = vand.u32 %v65, 4294901760
    %v1022 = vsub.f32 %v65, %v1021
    %1023 = vmatprep.subr.mxu0 %v1022
    %v1024 = vand.u32 %v64, 4294901760
    %v1025 = vsub.f32 %v64, %v1024
    %1026 = vmatpush1.msra.mxu0 %v1025
    %v1027 = vand.u32 %v69, 4294901760
    %v1028 = vsub.f32 %v69, %v1027
    %1029 = vmatprep.subr.mxu0 %v1028
    %v1030 = vand.u32 %v68, 4294901760
    %v1031 = vsub.f32 %v68, %v1030
    %1032 = vmatpush1.msra.mxu0 %v1031
    %v1033 = vand.u32 %v73, 4294901760
    %v1034 = vsub.f32 %v73, %v1033
    %1035 = vmatprep.subr.mxu0 %v1034
    %v1036 = vand.u32 %v72, 4294901760
    %v1037 = vsub.f32 %v72, %v1036
    %1038 = vmatpush1.msra.mxu0 %v1037
    %1039 = vmatprep.subr.mxu0 0.0
    %1040 = vmatpush1.msra.mxu0 0.0
    %1041 = vmatprep.subr.mxu0 0.0
    %1042 = vmatpush1.msra.mxu0 0.0
    %1043 = vmatprep.subr.mxu0 0.0
    %1044 = vmatpush1.msra.mxu0 0.0
    %1045 = vmatprep.subr.mxu0 0.0
    %1046 = vmatpush1.msra.mxu0 0.0
    %1047 = vmatprep.subr.mxu0 0.0
    %1048 = vmatpush1.msra.mxu0 0.0
    %1049 = vmatprep.subr.mxu0 0.0
    %1050 = vmatpush1.msra.mxu0 0.0
    %1051 = vmatprep.subr.mxu0 0.0
    %1052 = vmatpush1.msra.mxu0 0.0
    %1053 = vmatprep.subr.mxu0 0.0
    %1054 = vmatpush1.msra.mxu0 0.0
    %1055 = vmatprep.subr.mxu0 0.0
    %1056 = vmatpush1.msra.mxu0 0.0
    %1057 = vmatprep.subr.mxu0 0.0
    %1058 = vmatpush1.msra.mxu0 0.0
    %1059 = vmatprep.subr.mxu0 0.0
    %1060 = vmatpush1.msra.mxu0 0.0
    %1061 = vmatprep.subr.mxu0 0.0
    %1062 = vmatpush1.msra.mxu0 0.0
    %1063 = vmatprep.subr.mxu0 0.0
    %1064 = vmatpush1.msra.mxu0 0.0
    %1065 = vmatprep.subr.mxu0 0.0
    %1066 = vmatpush1.msra.mxu0 0.0
    %1067 = vmatprep.subr.mxu0 0.0
    %1068 = vmatpush1.msra.mxu0 0.0
    %1069 = vmatprep.subr.mxu0 0.0
    %1070 = vmatpush1.msra.mxu0 0.0
    %1071 = vmatprep.subr.mxu0 0.0
    %1072 = vmatpush1.msra.mxu0 0.0
    %1073 = vmatprep.subr.mxu0 0.0
    %1074 = vmatpush1.msra.mxu0 0.0
    %1075 = vmatprep.subr.mxu0 0.0
    %1076 = vmatpush1.msra.mxu0 0.0
    %1077 = vmatprep.subr.mxu0 0.0
    %1078 = vmatpush1.msra.mxu0 0.0
    %1079 = vmatprep.subr.mxu0 0.0
    %1080 = vmatpush1.msra.mxu0 0.0
    %1081 = vmatprep.subr.mxu0 0.0
    %1082 = vmatpush1.msra.mxu0 0.0
    %1083 = vmatprep.subr.mxu0 0.0
    %1084 = vmatpush1.msra.mxu0 0.0
    %1085 = vmatprep.subr.mxu0 0.0
    %1086 = vmatpush1.msra.mxu0 0.0
    %1087 = vmatprep.mubr.f32.mxu0 0.0
    %v1088 = vand.u32 %v98, 4294901760
    %v1089 = vsub.f32 %v98, %v1088
    %1090 = vmatmul.mubr.f32.gmra.mrb[0].mxu0 %v1089
    %v1091 = vpop.f32.mrb[0].mxu0
    %v1092 = vadd.f32 %v987, %v1091
    %v1093 = vpop.f32.mrb[0].mxu0
    %v1094 = vadd.f32 %v989, %v1093
    %1095 = vdwg.mxu0
    %v1096 = vand.u32 %v45, 4294901760
    %1097 = vmatprep.subr.mxu0 %v1096
    %v1098 = vand.u32 %v44, 4294901760
    %1099 = vmatpush1.msra.mxu0 %v1098
    %v1100 = vand.u32 %v49, 4294901760
    %1101 = vmatprep.subr.mxu0 %v1100
    %v1102 = vand.u32 %v48, 4294901760
    %1103 = vmatpush1.msra.mxu0 %v1102
    %v1104 = vand.u32 %v53, 4294901760
    %1105 = vmatprep.subr.mxu0 %v1104
    %v1106 = vand.u32 %v52, 4294901760
    %1107 = vmatpush1.msra.mxu0 %v1106
    %v1108 = vand.u32 %v57, 4294901760
    %1109 = vmatprep.subr.mxu0 %v1108
    %v1110 = vand.u32 %v56, 4294901760
    %1111 = vmatpush1.msra.mxu0 %v1110
    %v1112 = vand.u32 %v61, 4294901760
    %1113 = vmatprep.subr.mxu0 %v1112
    %v1114 = vand.u32 %v60, 4294901760
    %1115 = vmatpush1.msra.mxu0 %v1114
    %v1116 = vand.u32 %v65, 4294901760
    %1117 = vmatprep.subr.mxu0 %v1116
    %v1118 = vand.u32 %v64, 4294901760
    %1119 = vmatpush1.msra.mxu0 %v1118
    %v1120 = vand.u32 %v69, 4294901760
    %1121 = vmatprep.subr.mxu0 %v1120
    %v1122 = vand.u32 %v68, 4294901760
    %1123 = vmatpush1.msra.mxu0 %v1122
    %v1124 = vand.u32 %v73, 4294901760
    %1125 = vmatprep.subr.mxu0 %v1124
    %v1126 = vand.u32 %v72, 4294901760
    %1127 = vmatpush1.msra.mxu0 %v1126
    %1128 = vmatprep.subr.mxu0 0.0
    %1129 = vmatpush1.msra.mxu0 0.0
    %1130 = vmatprep.subr.mxu0 0.0
    %1131 = vmatpush1.msra.mxu0 0.0
    %1132 = vmatprep.subr.mxu0 0.0
    %1133 = vmatpush1.msra.mxu0 0.0
    %1134 = vmatprep.subr.mxu0 0.0
    %1135 = vmatpush1.msra.mxu0 0.0
    %1136 = vmatprep.subr.mxu0 0.0
    %1137 = vmatpush1.msra.mxu0 0.0
    %1138 = vmatprep.subr.mxu0 0.0
    %1139 = vmatpush1.msra.mxu0 0.0
    %1140 = vmatprep.subr.mxu0 0.0
    %1141 = vmatpush1.msra.mxu0 0.0
    %1142 = vmatprep.subr.mxu0 0.0
    %1143 = vmatpush1.msra.mxu0 0.0
    %1144 = vmatprep.subr.mxu0 0.0
    %1145 = vmatpush1.msra.mxu0 0.0
    %1146 = vmatprep.subr.mxu0 0.0
    %1147 = vmatpush1.msra.mxu0 0.0
    %1148 = vmatprep.subr.mxu0 0.0
    %1149 = vmatpush1.msra.mxu0 0.0
    %1150 = vmatprep.subr.mxu0 0.0
    %1151 = vmatpush1.msra.mxu0 0.0
    %1152 = vmatprep.subr.mxu0 0.0
    %1153 = vmatpush1.msra.mxu0 0.0
    %1154 = vmatprep.subr.mxu0 0.0
    %1155 = vmatpush1.msra.mxu0 0.0
    %1156 = vmatprep.subr.mxu0 0.0
    %1157 = vmatpush1.msra.mxu0 0.0
    %1158 = vmatprep.subr.mxu0 0.0
    %1159 = vmatpush1.msra.mxu0 0.0
    %1160 = vmatprep.subr.mxu0 0.0
    %1161 = vmatpush1.msra.mxu0 0.0
    %1162 = vmatprep.subr.mxu0 0.0
    %1163 = vmatpush1.msra.mxu0 0.0
    %1164 = vmatprep.subr.mxu0 0.0
    %1165 = vmatpush1.msra.mxu0 0.0
    %1166 = vmatprep.subr.mxu0 0.0
    %1167 = vmatpush1.msra.mxu0 0.0
    %1168 = vmatprep.subr.mxu0 0.0
    %1169 = vmatpush1.msra.mxu0 0.0
    %1170 = vmatprep.subr.mxu0 0.0
    %1171 = vmatpush1.msra.mxu0 0.0
    %1172 = vmatprep.subr.mxu0 0.0
    %1173 = vmatpush1.msra.mxu0 0.0
    %1174 = vmatprep.subr.mxu0 0.0
    %1175 = vmatpush1.msra.mxu0 0.0
    %1176 = vmatprep.mubr.f32.mxu0 0.0
    %v1177 = vand.u32 %v98, 4294901760
    %v1178 = vsub.f32 %v98, %v1177
    %v1179 = vand.u32 %v1178, 4294901760
    %1180 = vmatmul.mubr.f32.gmra.mrb[0].mxu0 %v1179
    %v1181 = vpop.f32.mrb[0].mxu0
    %v1182 = vadd.f32 %v1092, %v1181
    %v1183 = vpop.f32.mrb[0].mxu0
    %v1184 = vadd.f32 %v1094, %v1183
    %1185 = vdwg.mxu0
    %v1186 = vand.u32 %v45, 4294901760
    %v1187 = vsub.f32 %v45, %v1186
    %v1188 = vand.u32 %v1187, 4294901760
    %1189 = vmatprep.subr.mxu0 %v1188
    %v1190 = vand.u32 %v44, 4294901760
    %v1191 = vsub.f32 %v44, %v1190
    %v1192 = vand.u32 %v1191, 4294901760
    %1193 = vmatpush1.msra.mxu0 %v1192
    %v1194 = vand.u32 %v49, 4294901760
    %v1195 = vsub.f32 %v49, %v1194
    %v1196 = vand.u32 %v1195, 4294901760
    %1197 = vmatprep.subr.mxu0 %v1196
    %v1198 = vand.u32 %v48, 4294901760
    %v1199 = vsub.f32 %v48, %v1198
    %v1200 = vand.u32 %v1199, 4294901760
    %1201 = vmatpush1.msra.mxu0 %v1200
    %v1202 = vand.u32 %v53, 4294901760
    %v1203 = vsub.f32 %v53, %v1202
    %v1204 = vand.u32 %v1203, 4294901760
    %1205 = vmatprep.subr.mxu0 %v1204
    %v1206 = vand.u32 %v52, 4294901760
    %v1207 = vsub.f32 %v52, %v1206
    %v1208 = vand.u32 %v1207, 4294901760
    %1209 = vmatpush1.msra.mxu0 %v1208
    %v1210 = vand.u32 %v57, 4294901760
    %v1211 = vsub.f32 %v57, %v1210
    %v1212 = vand.u32 %v1211, 4294901760
    %1213 = vmatprep.subr.mxu0 %v1212
    %v1214 = vand.u32 %v56, 4294901760
    %v1215 = vsub.f32 %v56, %v1214
    %v1216 = vand.u32 %v1215, 4294901760
    %1217 = vmatpush1.msra.mxu0 %v1216
    %v1218 = vand.u32 %v61, 4294901760
    %v1219 = vsub.f32 %v61, %v1218
    %v1220 = vand.u32 %v1219, 4294901760
    %1221 = vmatprep.subr.mxu0 %v1220
    %v1222 = vand.u32 %v60, 4294901760
    %v1223 = vsub.f32 %v60, %v1222
    %v1224 = vand.u32 %v1223, 4294901760
    %1225 = vmatpush1.msra.mxu0 %v1224
    %v1226 = vand.u32 %v65, 4294901760
    %v1227 = vsub.f32 %v65, %v1226
    %v1228 = vand.u32 %v1227, 4294901760
    %1229 = vmatprep.subr.mxu0 %v1228
    %v1230 = vand.u32 %v64, 4294901760
    %v1231 = vsub.f32 %v64, %v1230
    %v1232 = vand.u32 %v1231, 4294901760
    %1233 = vmatpush1.msra.mxu0 %v1232
    %v1234 = vand.u32 %v69, 4294901760
    %v1235 = vsub.f32 %v69, %v1234
    %v1236 = vand.u32 %v1235, 4294901760
    %1237 = vmatprep.subr.mxu0 %v1236
    %v1238 = vand.u32 %v68, 4294901760
    %v1239 = vsub.f32 %v68, %v1238
    %v1240 = vand.u32 %v1239, 4294901760
    %1241 = vmatpush1.msra.mxu0 %v1240
    %v1242 = vand.u32 %v73, 4294901760
    %v1243 = vsub.f32 %v73, %v1242
    %v1244 = vand.u32 %v1243, 4294901760
    %1245 = vmatprep.subr.mxu0 %v1244
    %v1246 = vand.u32 %v72, 4294901760
    %v1247 = vsub.f32 %v72, %v1246
    %v1248 = vand.u32 %v1247, 4294901760
    %1249 = vmatpush1.msra.mxu0 %v1248
    %1250 = vmatprep.subr.mxu0 0.0
    %1251 = vmatpush1.msra.mxu0 0.0
    %1252 = vmatprep.subr.mxu0 0.0
    %1253 = vmatpush1.msra.mxu0 0.0
    %1254 = vmatprep.subr.mxu0 0.0
    %1255 = vmatpush1.msra.mxu0 0.0
    %1256 = vmatprep.subr.mxu0 0.0
    %1257 = vmatpush1.msra.mxu0 0.0
    %1258 = vmatprep.subr.mxu0 0.0
    %1259 = vmatpush1.msra.mxu0 0.0
    %1260 = vmatprep.subr.mxu0 0.0
    %1261 = vmatpush1.msra.mxu0 0.0
    %1262 = vmatprep.subr.mxu0 0.0
    %1263 = vmatpush1.msra.mxu0 0.0
    %1264 = vmatprep.subr.mxu0 0.0
    %1265 = vmatpush1.msra.mxu0 0.0
    %1266 = vmatprep.subr.mxu0 0.0
    %1267 = vmatpush1.msra.mxu0 0.0
    %1268 = vmatprep.subr.mxu0 0.0
    %1269 = vmatpush1.msra.mxu0 0.0
    %1270 = vmatprep.subr.mxu0 0.0
    %1271 = vmatpush1.msra.mxu0 0.0
    %1272 = vmatprep.subr.mxu0 0.0
    %1273 = vmatpush1.msra.mxu0 0.0
    %1274 = vmatprep.subr.mxu0 0.0
    %1275 = vmatpush1.msra.mxu0 0.0
    %1276 = vmatprep.subr.mxu0 0.0
    %1277 = vmatpush1.msra.mxu0 0.0
    %1278 = vmatprep.subr.mxu0 0.0
    %1279 = vmatpush1.msra.mxu0 0.0
    %1280 = vmatprep.subr.mxu0 0.0
    %1281 = vmatpush1.msra.mxu0 0.0
    %1282 = vmatprep.subr.mxu0 0.0
    %1283 = vmatpush1.msra.mxu0 0.0
    %1284 = vmatprep.subr.mxu0 0.0
    %1285 = vmatpush1.msra.mxu0 0.0
    %1286 = vmatprep.subr.mxu0 0.0
    %1287 = vmatpush1.msra.mxu0 0.0
    %1288 = vmatprep.subr.mxu0 0.0
    %1289 = vmatpush1.msra.mxu0 0.0
    %1290 = vmatprep.subr.mxu0 0.0
    %1291 = vmatpush1.msra.mxu0 0.0
    %1292 = vmatprep.subr.mxu0 0.0
    %1293 = vmatpush1.msra.mxu0 0.0
    %1294 = vmatprep.subr.mxu0 0.0
    %1295 = vmatpush1.msra.mxu0 0.0
    %1296 = vmatprep.subr.mxu0 0.0
    %1297 = vmatpush1.msra.mxu0 0.0
    %1298 = vmatprep.mubr.f32.mxu0 0.0
    %v1299 = vand.u32 %v98, 4294901760
    %1300 = vmatmul.mubr.f32.gmra.mrb[0].mxu0 %v1299
    %v1301 = vpop.f32.mrb[0].mxu0
    %v1302 = vadd.f32 %v1182, %v1301
    %v1303 = vpop.f32.mrb[0].mxu0
    %v1304 = vadd.f32 %v1184, %v1303
    %1305 = vdwg.mxu0
    %v1306 = vand.u32 %v45, 4294901760
    %1307 = vmatprep.subr.mxu0 %v1306
    %v1308 = vand.u32 %v44, 4294901760
    %1309 = vmatpush1.msra.mxu0 %v1308
    %v1310 = vand.u32 %v49, 4294901760
    %1311 = vmatprep.subr.mxu0 %v1310
    %v1312 = vand.u32 %v48, 4294901760
    %1313 = vmatpush1.msra.mxu0 %v1312
    %v1314 = vand.u32 %v53, 4294901760
    %1315 = vmatprep.subr.mxu0 %v1314
    %v1316 = vand.u32 %v52, 4294901760
    %1317 = vmatpush1.msra.mxu0 %v1316
    %v1318 = vand.u32 %v57, 4294901760
    %1319 = vmatprep.subr.mxu0 %v1318
    %v1320 = vand.u32 %v56, 4294901760
    %1321 = vmatpush1.msra.mxu0 %v1320
    %v1322 = vand.u32 %v61, 4294901760
    %1323 = vmatprep.subr.mxu0 %v1322
    %v1324 = vand.u32 %v60, 4294901760
    %1325 = vmatpush1.msra.mxu0 %v1324
    %v1326 = vand.u32 %v65, 4294901760
    %1327 = vmatprep.subr.mxu0 %v1326
    %v1328 = vand.u32 %v64, 4294901760
    %1329 = vmatpush1.msra.mxu0 %v1328
    %v1330 = vand.u32 %v69, 4294901760
    %1331 = vmatprep.subr.mxu0 %v1330
    %v1332 = vand.u32 %v68, 4294901760
    %1333 = vmatpush1.msra.mxu0 %v1332
    %v1334 = vand.u32 %v73, 4294901760
    %1335 = vmatprep.subr.mxu0 %v1334
    %v1336 = vand.u32 %v72, 4294901760
    %1337 = vmatpush1.msra.mxu0 %v1336
    %1338 = vmatprep.subr.mxu0 0.0
    %1339 = vmatpush1.msra.mxu0 0.0
    %1340 = vmatprep.subr.mxu0 0.0
    %1341 = vmatpush1.msra.mxu0 0.0
    %1342 = vmatprep.subr.mxu0 0.0
    %1343 = vmatpush1.msra.mxu0 0.0
    %1344 = vmatprep.subr.mxu0 0.0
    %1345 = vmatpush1.msra.mxu0 0.0
    %1346 = vmatprep.subr.mxu0 0.0
    %1347 = vmatpush1.msra.mxu0 0.0
    %1348 = vmatprep.subr.mxu0 0.0
    %1349 = vmatpush1.msra.mxu0 0.0
    %1350 = vmatprep.subr.mxu0 0.0
    %1351 = vmatpush1.msra.mxu0 0.0
    %1352 = vmatprep.subr.mxu0 0.0
    %1353 = vmatpush1.msra.mxu0 0.0
    %1354 = vmatprep.subr.mxu0 0.0
    %1355 = vmatpush1.msra.mxu0 0.0
    %1356 = vmatprep.subr.mxu0 0.0
    %1357 = vmatpush1.msra.mxu0 0.0
    %1358 = vmatprep.subr.mxu0 0.0
    %1359 = vmatpush1.msra.mxu0 0.0
    %1360 = vmatprep.subr.mxu0 0.0
    %1361 = vmatpush1.msra.mxu0 0.0
    %1362 = vmatprep.subr.mxu0 0.0
    %1363 = vmatpush1.msra.mxu0 0.0
    %1364 = vmatprep.subr.mxu0 0.0
    %1365 = vmatpush1.msra.mxu0 0.0
    %1366 = vmatprep.subr.mxu0 0.0
    %1367 = vmatpush1.msra.mxu0 0.0
    %1368 = vmatprep.subr.mxu0 0.0
    %1369 = vmatpush1.msra.mxu0 0.0
    %1370 = vmatprep.subr.mxu0 0.0
    %1371 = vmatpush1.msra.mxu0 0.0
    %1372 = vmatprep.subr.mxu0 0.0
    %1373 = vmatpush1.msra.mxu0 0.0
    %1374 = vmatprep.subr.mxu0 0.0
    %1375 = vmatpush1.msra.mxu0 0.0
    %1376 = vmatprep.subr.mxu0 0.0
    %1377 = vmatpush1.msra.mxu0 0.0
    %1378 = vmatprep.subr.mxu0 0.0
    %1379 = vmatpush1.msra.mxu0 0.0
    %1380 = vmatprep.subr.mxu0 0.0
    %1381 = vmatpush1.msra.mxu0 0.0
    %1382 = vmatprep.subr.mxu0 0.0
    %1383 = vmatpush1.msra.mxu0 0.0
    %1384 = vmatprep.subr.mxu0 0.0
    %1385 = vmatpush1.msra.mxu0 0.0
    %1386 = vmatprep.mubr.f32.mxu0 0.0
    %v1387 = vand.u32 %v98, 4294901760
    %1388 = vmatmul.mubr.f32.gmra.mrb[0].mxu0 %v1387
    %v1389 = vpop.f32.mrb[0].mxu0
    %v1390 = vadd.f32 %v1302, %v1389
    %v1391 = vpop.f32.mrb[0].mxu0
    %v1392 = vadd.f32 %v1304, %v1391
    %1393 = vdwg.mxu0
    %v1398 = vcombine.low %v743, %v745
    %v1399 = vcombine.low %v1390, %v1392
    %v1401 = vunpack.c.l.s4 1966171168
    %v1402 = vunpack.c.0.s8 %v1401
    %v1403 = vlaneseq
    %v1404 = vshrl.u32 %v1403, 7
    %v1405 = vsub.s32 %v1402, %v1404
    %v1406 = vrot.slane %v1398, %v1405
    %v1408 = vunpack.c.l.s4 1966171168
    %v1409 = vunpack.c.0.s8 %v1408
    %v1410 = vlaneseq
    %v1411 = vshrl.u32 %v1410, 7
    %v1412 = vsub.s32 %v1409, %v1411
    %v1413 = vrot.slane %v1399, %v1412
    %v1414 = vcombine.low %v1406, %v1413
    %v1416 = vunpack.c.l.s4 1966171168
    %v1417 = vunpack.c.0.s8 %v1416
    %v1418 = vlaneseq
    %v1419 = vshrl.u32 %v1418, 7
    %v1420 = vsub.s32 %v1417, %v1419
    %v1421 = vrot.slane %v1414, %v1420
    %v1423 = vlaneseq
    %vm1424 = vcmp.ge.s32.totalorder %v1423, 0
    %vm1425 = vcmp.lt.s32.totalorder %v1423, 512
    %vm1426 = vmand %vm1424, %vm1425
    %1427 = vst.msk [vmem:[#allocation7] sm:$0xf] %vm1426, %v1421
    // Predicated region
    $region22: #{tpu_custom_call.1} parent=1 // pred_check
      _
    $region23: #{tpu_custom_call.1} parent=1 // pred_check_branch
      %1429 = sbr.rel (0) target = $region25
    $region24: #{tpu_custom_call.1} parent=1 // pred_region
      %s1431 = ssub.s32 64, 64
      %1432 = vsyncadd [#allocation4], %s1431
      %s1434 = sshll.u32 [#allocation7], 4
      %s1435 = int_to_ptr.vmem [resolvable:$true] %s1434
      %1437 = dma.vmem_to_hbm [thread:$0]  %s1435, 64, %s3, [#allocation4]
    $region25: #{tpu_custom_call.1} parent=1 // pred_fallthru
      _
    // Predicated region
    $region26: #{tpu_custom_call.1} parent=1 // pred_check
      _
    $region27: #{tpu_custom_call.1} parent=1 // pred_check_branch
      %1439 = sbr.rel (0) target = $region29
    $region28: #{tpu_custom_call.1} parent=1 // pred_region
      %1440 = dma.done [#allocation4], 64
    $region29: #{tpu_custom_call.1} parent=1 // pred_fallthru
      _
    %1441 = vsyncpa [#allocation3], 1
    %1442 = vsyncpa [#allocation6], 1
    %1443 = vsyncpa [#allocation4], 1

</llo_original>
